<compile_context>
chip_gen: v7x
topology: tpu7x:2x2x1
jax: 0.10.0
libtpu: 0.0.40
codegen_flags: <defaults>
</compile_context>

<pallas_src>
import jax
import jax.numpy as jnp
from jax.experimental import pallas as pl
from jax.experimental.pallas import tpu as pltpu

# ----------------------------- model config ---------------------------------
NUM_EXPERTS = 3
NUM_TASKS = 2                      # ('ctr', 'ctcvr'), both 'binary'
EXPERT_HIDDEN = (64, 32)           # scaled-down from (256, 128)
GATE_HIDDEN = (16,)                # scaled-down from (64,)
TOWER_HIDDEN = (16,)               # scaled-down from (64,)
INIT_STD = 1e-4

BATCH = 8
NUM_SPARSE = 2                     # two sparse feature columns
EMB_DIM = 8                        # embedding dim per sparse feature
VOCAB = 10
NUM_DENSE = 16
INPUT_DIM = NUM_SPARSE * EMB_DIM + NUM_DENSE   # 32

E, T = NUM_EXPERTS, NUM_TASKS
H1, H2 = EXPERT_HIDDEN
G = GATE_HIDDEN[0]
T1 = TOWER_HIDDEN[0]

# ---------------- padded / fused layer layout (all lane-tile aligned) -------
L1P = 256                 # [0,192)=expert hidden-1 (3x64), [192,224)=gate hidden (2x16), pad
EXP_PAD = 128             # expert-output region: [0,96) real (3x32), [96,128) zero pad
L2P = EXP_PAD + T * EXP_PAD   # 384 : [0,128)=experts | [128,256)=task-0 gates | [256,384)=task-1 gates
L3P = 128                 # [0,16)=tower-0 hidden, [16,32)=tower-1 hidden, pad
OUT_PAD = 128             # lane-dense output slab; lanes [0,T) are the task outputs
NEG = -1e9                # softmax mask for dummy gate lanes


# ------------------------------ Pallas kernel -------------------------------
def mmoe_kernel(x_ref, w1_ref, w2_ref, w3_ref, w4_ref,
                b1_ref, b2_ref, b3_ref, out_ref):
    x = x_ref[...]                                                   # [tb, D] bf16

    # fused layer 1: all expert layer-1 and both gate layer-1 in one matmul
    h1 = jnp.dot(x, w1_ref[...], preferred_element_type=jnp.float32) + b1_ref[...]
    h1 = jnp.maximum(h1, 0.0)                                        # [tb, 256] f32

    # fused layer 2: block-diag expert layer-2 + lane-replicated gate logits
    y2 = jnp.dot(h1.astype(jnp.bfloat16), w2_ref[...],
                 preferred_element_type=jnp.float32) + b2_ref[...]   # [tb, 384] f32

    h2 = jnp.maximum(y2[:, 0:EXP_PAD], 0.0)          # [tb,128] expert outs (>=96 are 0)
    g0 = y2[:, EXP_PAD:2 * EXP_PAD]                  # [tb,128] task-0 logits (replicated xH2)
    g1 = y2[:, 2 * EXP_PAD:3 * EXP_PAD]              # [tb,128] task-1 logits (dummy lanes=-1e9)

    # per-task softmax over experts, computed on wide tile-aligned slabs
    m0 = jnp.max(g0, axis=1, keepdims=True)
    m1 = jnp.max(g1, axis=1, keepdims=True)
    e0 = jnp.exp(g0 - m0)                            # dummy lanes -> 0
    e1 = jnp.exp(g1 - m1)
    # each real exp is replicated H2 times, so sum over 128 lanes = H2 * true sum
    inv0 = float(H2) / jnp.sum(e0, axis=1, keepdims=True)
    inv1 = float(H2) / jnp.sum(e1, axis=1, keepdims=True)

    # gated expert outputs for both tasks; expert-sum is folded into w3
    prod = jnp.concatenate([e0 * inv0 * h2, e1 * inv1 * h2], axis=1)  # [tb, 256]

    # fused towers: (sum over experts) + tower layer-1, block-diag per task
    tow = jnp.dot(prod.astype(jnp.bfloat16), w3_ref[...],
                  preferred_element_type=jnp.float32) + b3_ref[...]   # [tb, 128]
    tow = jnp.maximum(tow, 0.0)

    # block-diag tower-final -> lane-dense output slab (lanes [0,T) are the tasks)
    logits = jnp.dot(tow.astype(jnp.bfloat16), w4_ref[...],
                     preferred_element_type=jnp.float32)              # [tb, 128]
    # PredictionLayer('binary'): zero-initialized bias, then sigmoid
    out_ref[...] = jax.nn.sigmoid(logits)


def _round_up(a, m):
    return (a + m - 1) // m * m


@jax.jit
def mmoe_forward(dnn_input, packed):
    w1, w2, w3, w4, b1, b2, b3 = packed
    B, D = dnn_input.shape

    # batch tiling: big tiles, padded ragged tail, >=2 grid steps for large B
    tile_b = min(512, _round_up(B, 16))
    Bp = _round_up(B, tile_b)
    x = dnn_input.astype(jnp.bfloat16)
    if Bp != B:
        x = jnp.pad(x, ((0, Bp - B), (0, 0)))
    grid = (Bp // tile_b,)

    def resident(a):                       # grid-invariant (weights stay in VMEM)
        return pl.BlockSpec(a.shape, lambda i: (0, 0))

    mm_elems = D * L1P + L1P * L2P + (T * EXP_PAD) * L3P + L3P * OUT_PAD
    cost = pl.CostEstimate(
        flops=2 * Bp * mm_elems,
        transcendentals=Bp * (T * EXP_PAD + OUT_PAD),
        bytes_accessed=(Bp * D * 2 + Bp * OUT_PAD * 4
                        + 2 * mm_elems + 4 * (L1P + L2P + L3P)),
    )

    out = pl.pallas_call(
        mmoe_kernel,
        out_shape=jax.ShapeDtypeStruct((Bp, OUT_PAD), jnp.float32),
        grid=grid,
        in_specs=[
            pl.BlockSpec((tile_b, D), lambda i: (i, 0)),
            resident(w1), resident(w2), resident(w3), resident(w4),
            resident(b1), resident(b2), resident(b3),
        ],
        out_specs=pl.BlockSpec((tile_b, OUT_PAD), lambda i: (i, 0)),
        compiler_params=pltpu.CompilerParams(
            dimension_semantics=("parallel",)),
        cost_estimate=cost,
    )(x, w1, w2, w3, w4, b1, b2, b3)

    return out[:B, :NUM_TASKS]


# ------------------------------ param init ----------------------------------
def init_params(key, std=INIT_STD):
    ks = jax.random.split(key, 6)
    D = INPUT_DIM
    ew1 = jax.random.normal(ks[0], (E, D, H1), jnp.float32) * std
    eb1 = jnp.zeros((E, 1, H1), jnp.float32)
    ew2 = jax.random.normal(ks[1], (E, H1, H2), jnp.float32) * std
    eb2 = jnp.zeros((E, 1, H2), jnp.float32)
    gw1 = jax.random.normal(ks[2], (T, D, G), jnp.float32) * std
    gb1 = jnp.zeros((T, 1, G), jnp.float32)
    gfw = jax.random.normal(ks[3], (T, G, E), jnp.float32) * std     # bias=False
    tw1 = jax.random.normal(ks[4], (T, H2, T1), jnp.float32) * std
    tb1 = jnp.zeros((T, 1, T1), jnp.float32)
    tfw = jax.random.normal(ks[5], (T, T1, 1), jnp.float32) * std    # bias=False
    return (ew1, eb1, ew2, eb2, gw1, gb1, gfw, tw1, tb1, tfw)


# ----------------------- host-side weight packing (glue) ---------------------
def pack_params(params):
    (ew1, eb1, ew2, eb2, gw1, gb1, gfw, tw1, tb1, tfw) = params
    D = INPUT_DIM

    # layer 1: expert layer-1 and gate layer-1 concatenated, padded to 256 lanes
    w1 = jnp.zeros((D, L1P), jnp.float32)
    b1 = jnp.zeros((1, L1P), jnp.float32)
    for e in range(E):
        w1 = w1.at[:, e * H1:(e + 1) * H1].set(ew1[e])
        b1 = b1.at[:, e * H1:(e + 1) * H1].set(eb1[e])
    for t in range(T):
        w1 = w1.at[:, E * H1 + t * G: E * H1 + (t + 1) * G].set(gw1[t])
        b1 = b1.at[:, E * H1 + t * G: E * H1 + (t + 1) * G].set(gb1[t])

    # layer 2: block-diag expert layer-2 + gate-final with columns replicated xH2
    w2 = jnp.zeros((L1P, L2P), jnp.float32)
    b2 = jnp.zeros((1, L2P), jnp.float32)
    for e in range(E):
        w2 = w2.at[e * H1:(e + 1) * H1, e * H2:(e + 1) * H2].set(ew2[e])
        b2 = b2.at[:, e * H2:(e + 1) * H2].set(eb2[e])
    for t in range(T):
        base = EXP_PAD + t * EXP_PAD
        rows = slice(E * H1 + t * G, E * H1 + (t + 1) * G)
        for e in range(E):
            col = gfw[t][:, e:e + 1]                          # [G, 1]
            w2 = w2.at[rows, base + e * H2: base + (e + 1) * H2].set(
                jnp.tile(col, (1, H2)))                       # replicate logit over H2 lanes
        # dummy 4th expert block: bias -1e9 masks it out of the softmax
        b2 = b2.at[:, base + E * H2: base + EXP_PAD].set(NEG)

    # towers: expert-sum + tower layer-1 folded into one block-structured weight
    w3 = jnp.zeros((T * EXP_PAD, L3P), jnp.float32)
    b3 = jnp.zeros((1, L3P), jnp.float32)
    for t in range(T):
        for e in range(E):
            w3 = w3.at[t * EXP_PAD + e * H2: t * EXP_PAD + (e + 1) * H2,
                       t * T1:(t + 1) * T1].set(tw1[t])
        b3 = b3.at[:, t * T1:(t + 1) * T1].set(tb1[t])

    # tower-final: lane-dense [L3P, 128] so the kernel's output store is unmasked
    w4 = jnp.zeros((L3P, OUT_PAD), jnp.float32)
    for t in range(T):
        w4 = w4.at[t * T1:(t + 1) * T1, t].set(tfw[t][:, 0])

    bf = lambda a: a.astype(jnp.bfloat16)
    return (bf(w1), bf(w2), bf(w3), bf(w4), b1, b2, b3)


# ------------------------- pure-JAX reference (check) ------------------------
def mmoe_reference(x, params):
    (ew1, eb1, ew2, eb2, gw1, gb1, gfw, tw1, tb1, tfw) = params
    experts = []
    for e in range(E):
        h = jax.nn.relu(x @ ew1[e] + eb1[e])
        h = jax.nn.relu(h @ ew2[e] + eb2[e])
        experts.append(h)
    experts = jnp.stack(experts, axis=1)                 # [B, E, H2]
    outs = []
    for t in range(T):
        g = jax.nn.relu(x @ gw1[t] + gb1[t])
        gate = jax.nn.softmax(g @ gfw[t], axis=1)        # [B, E]
        mix = jnp.einsum('be,beh->bh', gate, experts)
        tow = jax.nn.relu(mix @ tw1[t] + tb1[t])
        outs.append(jax.nn.sigmoid(tow @ tfw[t]))
    return jnp.concatenate(outs, axis=-1)


# ------------------------------------ main -----------------------------------
if __name__ == "__main__":
    key = jax.random.PRNGKey(0)
    k_emb, k_ids, k_dense, k_params = jax.random.split(key, 4)

    # plain-JAX glue: sparse embedding lookup + dense values -> combined dnn_input
    # TODO(synk): the full feature-column machinery (input_from_feature_columns)
    # stays outside the kernel; only the concatenated dnn_input feeds Pallas.
    emb_tables = jax.random.normal(k_emb, (NUM_SPARSE, VOCAB, EMB_DIM), jnp.float32) * 0.1
    sparse_ids = jax.random.randint(k_ids, (BATCH, NUM_SPARSE), 0, VOCAB)
    dense_vals = jax.random.normal(k_dense, (BATCH, NUM_DENSE), jnp.float32)

    sparse_emb = jnp.stack(
        [emb_tables[f][sparse_ids[:, f]] for f in range(NUM_SPARSE)], axis=1
    )                                                    # [B, NUM_SPARSE, EMB_DIM]
    dnn_input = jnp.concatenate(
        [sparse_emb.reshape(BATCH, -1), dense_vals], axis=-1
    ).astype(jnp.float32)                                # [B, INPUT_DIM]

    # use a larger weight scale than INIT_STD so the correctness check is
    # non-trivial (forward semantics are unchanged).
    params = init_params(k_params, std=0.1)
    packed = pack_params(params)

    out = jax.block_until_ready(mmoe_forward(dnn_input, packed))
    ref = mmoe_reference(dnn_input, params)

    assert out.shape == (BATCH, NUM_TASKS), out.shape
    assert bool(jnp.all(jnp.isfinite(out)))
    # bf16 matmul operands with f32 accumulation -> loosened tolerance vs f32 ref
    assert jnp.allclose(out, ref, atol=2e-2, rtol=0.0), (out, ref)

    print("KERNEL_OK")
</pallas_src>

<mosaic_0001>
module attributes {stable_mosaic.version = 11 : i64} {
  func.func @mmoe_kernel(%arg0: i32, %arg1: memref<16x32xbf16, #tpu.memory_space<vmem>>, %arg2: memref<32x256xbf16, #tpu.memory_space<vmem>>, %arg3: memref<256x384xbf16, #tpu.memory_space<vmem>>, %arg4: memref<256x128xbf16, #tpu.memory_space<vmem>>, %arg5: memref<128x128xbf16, #tpu.memory_space<vmem>>, %arg6: memref<1x256xf32, #tpu.memory_space<vmem>>, %arg7: memref<1x384xf32, #tpu.memory_space<vmem>>, %arg8: memref<1x128xf32, #tpu.memory_space<vmem>>, %arg9: memref<16x128xf32, #tpu.memory_space<vmem>>) attributes {dimension_semantics = [#tpu.dimension_semantics<parallel>], iteration_bounds = array<i64: 1>, scalar_prefetch = 0 : i64, scratch_operands = 0 : i64, tpu.core_type = #tpu.core_type<tc>, window_params = [{transform_indices = @transform_0, window_bounds = array<i64: 16, 32>}, {pipeline_mode = #tpu.pipeline_mode<synchronous>, transform_indices = @transform_1, window_bounds = array<i64: 32, 256>}, {pipeline_mode = #tpu.pipeline_mode<synchronous>, transform_indices = @transform_2, window_bounds = array<i64: 256, 384>}, {pipeline_mode = #tpu.pipeline_mode<synchronous>, transform_indices = @transform_3, window_bounds = array<i64: 256, 128>}, {pipeline_mode = #tpu.pipeline_mode<synchronous>, transform_indices = @transform_4, window_bounds = array<i64: 128, 128>}, {pipeline_mode = #tpu.pipeline_mode<synchronous>, transform_indices = @transform_5, window_bounds = array<i64: 1, 256>}, {pipeline_mode = #tpu.pipeline_mode<synchronous>, transform_indices = @transform_6, window_bounds = array<i64: 1, 384>}, {pipeline_mode = #tpu.pipeline_mode<synchronous>, transform_indices = @transform_7, window_bounds = array<i64: 1, 128>}, {transform_indices = @transform_8, window_bounds = array<i64: 16, 128>}]} {
    %c0 = arith.constant 0 : index
    %c0_0 = arith.constant 0 : index
    %0 = vector.load %arg1[%c0, %c0_0] : memref<16x32xbf16, #tpu.memory_space<vmem>>, vector<16x32xbf16>
    %c0_1 = arith.constant 0 : index
    %c0_2 = arith.constant 0 : index
    %1 = vector.load %arg2[%c0_1, %c0_2] : memref<32x256xbf16, #tpu.memory_space<vmem>>, vector<32x256xbf16>
    %cst = arith.constant dense<0.000000e+00> : vector<16x256xf32>
    %2 = tpu.matmul %0, %1, %cst {dimension_numbers = #tpu.dot_dimension_numbers<[1], [0], [0], [1], [0, 0, 1, 1], [], []>} : vector<16x32xbf16>, vector<32x256xbf16>, vector<16x256xf32> -> vector<16x256xf32>
    %c0_3 = arith.constant 0 : index
    %c0_4 = arith.constant 0 : index
    %3 = vector.load %arg6[%c0_3, %c0_4] : memref<1x256xf32, #tpu.memory_space<vmem>>, vector<1x256xf32>
    %4 = vector.broadcast %3 : vector<1x256xf32> to vector<16x256xf32>
    %5 = arith.addf %2, %4 : vector<16x256xf32>
    %cst_5 = arith.constant 0.000000e+00 : f32
    %6 = vector.broadcast %cst_5 : f32 to vector<16x256xf32>
    %7 = arith.maximumf %5, %6 : vector<16x256xf32>
    %8 = arith.truncf %7 : vector<16x256xf32> to vector<16x256xbf16>
    %c0_6 = arith.constant 0 : index
    %c0_7 = arith.constant 0 : index
    %9 = vector.load %arg3[%c0_6, %c0_7] : memref<256x384xbf16, #tpu.memory_space<vmem>>, vector<256x384xbf16>
    %cst_8 = arith.constant dense<0.000000e+00> : vector<16x384xf32>
    %10 = tpu.matmul %8, %9, %cst_8 {dimension_numbers = #tpu.dot_dimension_numbers<[1], [0], [0], [1], [0, 0, 1, 1], [], []>} : vector<16x256xbf16>, vector<256x384xbf16>, vector<16x384xf32> -> vector<16x384xf32>
    %c0_9 = arith.constant 0 : index
    %c0_10 = arith.constant 0 : index
    %11 = vector.load %arg7[%c0_9, %c0_10] : memref<1x384xf32, #tpu.memory_space<vmem>>, vector<1x384xf32>
    %12 = vector.broadcast %11 : vector<1x384xf32> to vector<16x384xf32>
    %13 = arith.addf %10, %12 : vector<16x384xf32>
    %14 = vector.extract_strided_slice %13 {offsets = [0, 0], sizes = [16, 128], strides = [1, 1]} : vector<16x384xf32> to vector<16x128xf32>
    %cst_11 = arith.constant 0.000000e+00 : f32
    %15 = vector.broadcast %cst_11 : f32 to vector<16x128xf32>
    %16 = arith.maximumf %14, %15 : vector<16x128xf32>
    %17 = vector.extract_strided_slice %13 {offsets = [0, 128], sizes = [16, 128], strides = [1, 1]} : vector<16x384xf32> to vector<16x128xf32>
    %18 = vector.extract_strided_slice %13 {offsets = [0, 256], sizes = [16, 128], strides = [1, 1]} : vector<16x384xf32> to vector<16x128xf32>
    %cst_12 = arith.constant dense<0xFF800000> : vector<16xf32>
    %19 = vector.multi_reduction <maximumf>, %17, %cst_12 [1] : vector<16x128xf32> to vector<16xf32>
    %20 = vector.shape_cast %19 : vector<16xf32> to vector<16x1xf32>
    %cst_13 = arith.constant dense<0xFF800000> : vector<16xf32>
    %21 = vector.multi_reduction <maximumf>, %18, %cst_13 [1] : vector<16x128xf32> to vector<16xf32>
    %22 = vector.shape_cast %21 : vector<16xf32> to vector<16x1xf32>
    %23 = vector.broadcast %20 : vector<16x1xf32> to vector<16x128xf32>
    %24 = arith.subf %17, %23 : vector<16x128xf32>
    %25 = math.exp %24 : vector<16x128xf32>
    %26 = vector.broadcast %22 : vector<16x1xf32> to vector<16x128xf32>
    %27 = arith.subf %18, %26 : vector<16x128xf32>
    %28 = math.exp %27 : vector<16x128xf32>
    %cst_14 = arith.constant dense<0.000000e+00> : vector<16xf32>
    %29 = vector.multi_reduction <add>, %25, %cst_14 [1] : vector<16x128xf32> to vector<16xf32>
    %30 = vector.shape_cast %29 : vector<16xf32> to vector<16x1xf32>
    %cst_15 = arith.constant 3.200000e+01 : f32
    %31 = vector.broadcast %cst_15 : f32 to vector<16x1xf32>
    %32 = arith.divf %31, %30 : vector<16x1xf32>
    %cst_16 = arith.constant dense<0.000000e+00> : vector<16xf32>
    %33 = vector.multi_reduction <add>, %28, %cst_16 [1] : vector<16x128xf32> to vector<16xf32>
    %34 = vector.shape_cast %33 : vector<16xf32> to vector<16x1xf32>
    %cst_17 = arith.constant 3.200000e+01 : f32
    %35 = vector.broadcast %cst_17 : f32 to vector<16x1xf32>
    %36 = arith.divf %35, %34 : vector<16x1xf32>
    %37 = vector.broadcast %32 : vector<16x1xf32> to vector<16x128xf32>
    %38 = arith.mulf %25, %37 : vector<16x128xf32>
    %39 = arith.mulf %38, %16 : vector<16x128xf32>
    %40 = vector.broadcast %36 : vector<16x1xf32> to vector<16x128xf32>
    %41 = arith.mulf %28, %40 : vector<16x128xf32>
    %42 = arith.mulf %41, %16 : vector<16x128xf32>
    %43 = tpu.concatenate %39, %42 in 1 : vector<16x128xf32>, vector<16x128xf32> -> vector<16x256xf32>
    %44 = arith.truncf %43 : vector<16x256xf32> to vector<16x256xbf16>
    %c0_18 = arith.constant 0 : index
    %c0_19 = arith.constant 0 : index
    %45 = vector.load %arg4[%c0_18, %c0_19] : memref<256x128xbf16, #tpu.memory_space<vmem>>, vector<256x128xbf16>
    %cst_20 = arith.constant dense<0.000000e+00> : vector<16x128xf32>
    %46 = tpu.matmul %44, %45, %cst_20 {dimension_numbers = #tpu.dot_dimension_numbers<[1], [0], [0], [1], [0, 0, 1, 1], [], []>} : vector<16x256xbf16>, vector<256x128xbf16>, vector<16x128xf32> -> vector<16x128xf32>
    %c0_21 = arith.constant 0 : index
    %c0_22 = arith.constant 0 : index
    %47 = vector.load %arg8[%c0_21, %c0_22] : memref<1x128xf32, #tpu.memory_space<vmem>>, vector<1x128xf32>
    %48 = vector.broadcast %47 : vector<1x128xf32> to vector<16x128xf32>
    %49 = arith.addf %46, %48 : vector<16x128xf32>
    %cst_23 = arith.constant 0.000000e+00 : f32
    %50 = vector.broadcast %cst_23 : f32 to vector<16x128xf32>
    %51 = arith.maximumf %49, %50 : vector<16x128xf32>
    %52 = arith.truncf %51 : vector<16x128xf32> to vector<16x128xbf16>
    %c0_24 = arith.constant 0 : index
    %c0_25 = arith.constant 0 : index
    %53 = vector.load %arg5[%c0_24, %c0_25] : memref<128x128xbf16, #tpu.memory_space<vmem>>, vector<128x128xbf16>
    %cst_26 = arith.constant dense<0.000000e+00> : vector<16x128xf32>
    %54 = tpu.matmul %52, %53, %cst_26 {dimension_numbers = #tpu.dot_dimension_numbers<[1], [0], [0], [1], [0, 0, 1, 1], [], []>} : vector<16x128xbf16>, vector<128x128xbf16>, vector<16x128xf32> -> vector<16x128xf32>
    %55 = arith.negf %54 : vector<16x128xf32>
    %56 = math.exp %55 : vector<16x128xf32>
    %cst_27 = arith.constant 1.000000e+00 : f32
    %57 = vector.broadcast %cst_27 : f32 to vector<16x128xf32>
    %58 = arith.addf %57, %56 : vector<16x128xf32>
    %59 = arith.divf %57, %58 : vector<16x128xf32>
    %c0_28 = arith.constant 0 : index
    %c0_29 = arith.constant 0 : index
    %60 = vector.load %arg9[%c0_28, %c0_29] : memref<16x128xf32, #tpu.memory_space<vmem>>, vector<16x128xf32>
    tpu.vector_store %arg9[%c0_28, %c0_29], %59 {strides = array<i32>} : memref<16x128xf32, #tpu.memory_space<vmem>>, vector<16x128xf32>,
    return
  }
  func.func @transform_0(%arg0: i32) -> (i32, i32) {
    %c0_i32 = arith.constant 0 : i32
    %c0_i32_0 = arith.constant 0 : i32
    return %arg0, %c0_i32 : i32, i32
  }
  func.func @transform_1(%arg0: i32) -> (i32, i32) {
    %c0_i32 = arith.constant 0 : i32
    %c0_i32_0 = arith.constant 0 : i32
    %c0_i32_1 = arith.constant 0 : i32
    return %c0_i32, %c0_i32_0 : i32, i32
  }
  func.func @transform_2(%arg0: i32) -> (i32, i32) {
    %c0_i32 = arith.constant 0 : i32
    %c0_i32_0 = arith.constant 0 : i32
    %c0_i32_1 = arith.constant 0 : i32
    return %c0_i32, %c0_i32_0 : i32, i32
  }
  func.func @transform_3(%arg0: i32) -> (i32, i32) {
    %c0_i32 = arith.constant 0 : i32
    %c0_i32_0 = arith.constant 0 : i32
    %c0_i32_1 = arith.constant 0 : i32
    return %c0_i32, %c0_i32_0 : i32, i32
  }
  func.func @transform_4(%arg0: i32) -> (i32, i32) {
    %c0_i32 = arith.constant 0 : i32
    %c0_i32_0 = arith.constant 0 : i32
    %c0_i32_1 = arith.constant 0 : i32
    return %c0_i32, %c0_i32_0 : i32, i32
  }
  func.func @transform_5(%arg0: i32) -> (i32, i32) {
    %c0_i32 = arith.constant 0 : i32
    %c0_i32_0 = arith.constant 0 : i32
    %c0_i32_1 = arith.constant 0 : i32
    return %c0_i32, %c0_i32_0 : i32, i32
  }
  func.func @transform_6(%arg0: i32) -> (i32, i32) {
    %c0_i32 = arith.constant 0 : i32
    %c0_i32_0 = arith.constant 0 : i32
    %c0_i32_1 = arith.constant 0 : i32
    return %c0_i32, %c0_i32_0 : i32, i32
  }
  func.func @transform_7(%arg0: i32) -> (i32, i32) {
    %c0_i32 = arith.constant 0 : i32
    %c0_i32_0 = arith.constant 0 : i32
    %c0_i32_1 = arith.constant 0 : i32
    return %c0_i32, %c0_i32_0 : i32, i32
  }
  func.func @transform_8(%arg0: i32) -> (i32, i32) {
    %c0_i32 = arith.constant 0 : i32
    %c0_i32_0 = arith.constant 0 : i32
    return %arg0, %c0_i32 : i32, i32
  }
}

</mosaic_0001>

<llo_original>
// kernel: mmoe_forward.1
$region0: #{mmoe_forward.1}
  #allocation0 [shape = 'u32[]', space=smem, size = 0x4, offset = 0x4, fixed_abs, tag = 'smem constant byte address 0x4 - core index']
  #allocation1 [shape = 'u32[144,128]{1,0:T(1,128)}', space=vmem, size = 0x12000, scoped, tag = 'internal scratch']
  %s0 = inlined_call_operand.vmem [shape: bf16[16,32], index: 0, kind: input, shape index: {}]
  %s1 = inlined_call_operand.hbm [shape: bf16[32,256], index: 1, kind: input, shape index: {}]
  %s2 = inlined_call_operand.hbm [shape: bf16[256,384], index: 2, kind: input, shape index: {}]
  %s3 = inlined_call_operand.hbm [shape: bf16[256,128], index: 3, kind: input, shape index: {}]
  %s4 = inlined_call_operand.hbm [shape: bf16[128,128], index: 4, kind: input, shape index: {}]
  %s5 = inlined_call_operand.vmem [shape: f32[1,256], index: 5, kind: input, shape index: {}]
  %s6 = inlined_call_operand.vmem [shape: f32[1,384], index: 6, kind: input, shape index: {}]
  %s7 = inlined_call_operand.vmem [shape: f32[1,128], index: 7, kind: input, shape index: {}]
  %s8 = inlined_call_operand.vmem [shape: f32[16,128], index: 8, kind: output, shape index: {}]
  %s9 = sld [smem:[#allocation0]]
  $region58: #{mmoe_forward.1} parent=0
    _
  %s11 = ssub.s32 1, %s9
  %s12 = scalar_select 0, %s11, %s9
  $region1: #{mmoe_forward.1} parent=0
    #allocation2 [shape = 'u8[16384]{0}', space=vmem, size = 0x4000, scoped, tag = 'input window, operand 1, single buffered']
    #allocation3 [shape = 's32[1]{0}', space=sflag, size = 0x4, scoped, tag = 'scoped memory for mmoe_forward.1']
    #allocation4 [shape = 'u8[196608]{0}', space=vmem, size = 0x30000, scoped, tag = 'input window, operand 2, single buffered']
    #allocation5 [shape = 's32[1]{0}', space=sflag, size = 0x4, scoped, tag = 'scoped memory for mmoe_forward.1']
    #allocation6 [shape = 'u8[65536]{0}', space=vmem, size = 0x10000, scoped, tag = 'input window, operand 3, single buffered']
    #allocation7 [shape = 'u8[32768]{0}', space=vmem, size = 0x8000, scoped, tag = 'input window, operand 4, single buffered']
    #allocation8 [shape = 's32[1]{0}', space=sflag, size = 0x4, scoped, tag = 'scoped memory for mmoe_forward.1']
    %13 = vsyncpa [#allocation3], 0
    %14 = vsyncpa [#allocation5], 0
    %15 = vsyncpa [#allocation8], 0
    // Predicated region
    $region2: #{mmoe_forward.1} parent=1 // pred_check
      _
    $region3: #{mmoe_forward.1} parent=1 // pred_check_branch
      %17 = sbr.rel (0) target = $region5
    $region4: #{mmoe_forward.1} parent=1 // pred_region
      _
    $region5: #{mmoe_forward.1} parent=1 // pred_fallthru
      _
    // Predicated region
    $region6: #{mmoe_forward.1} parent=1 // pred_check
      _
    $region7: #{mmoe_forward.1} parent=1 // pred_check_branch
      %19 = sbr.rel (0) target = $region9
    $region8: #{mmoe_forward.1} parent=1 // pred_region
      %s21 = ssub.s32 512, 512
      %22 = vsyncadd [#allocation3], %s21
      %s23 = sshll.u32 [#allocation2], 4
      %s24 = int_to_ptr.vmem [resolvable:$true] %s23
      %29 = dma.hbm_to_vmem [thread:$0]  %s1, 512, %s24, [#allocation3], 128, 128, 8
    $region9: #{mmoe_forward.1} parent=1 // pred_fallthru
      _
    // Predicated region
    $region10: #{mmoe_forward.1} parent=1 // pred_check
      _
    $region11: #{mmoe_forward.1} parent=1 // pred_check_branch
      %31 = sbr.rel (0) target = $region13
    $region12: #{mmoe_forward.1} parent=1 // pred_region
      %s33 = ssub.s32 6144, 6144
      %34 = vsyncadd [#allocation5], %s33
      %s35 = sshll.u32 [#allocation4], 4
      %s36 = int_to_ptr.vmem [resolvable:$true] %s35
      %41 = dma.hbm_to_vmem [thread:$0]  %s2, 6144, %s36, [#allocation5], 192, 192, 12
    $region13: #{mmoe_forward.1} parent=1 // pred_fallthru
      _
    // Predicated region
    $region14: #{mmoe_forward.1} parent=1 // pred_check
      _
    $region15: #{mmoe_forward.1} parent=1 // pred_check_branch
      %43 = sbr.rel (0) target = $region17
    $region16: #{mmoe_forward.1} parent=1 // pred_region
      %s45 = ssub.s32 2048, 2048
      %46 = vsyncadd [#allocation5], %s45
      %s47 = sshll.u32 [#allocation6], 4
      %s48 = int_to_ptr.vmem [resolvable:$true] %s47
      %53 = dma.hbm_to_vmem [thread:$0]  %s3, 2048, %s48, [#allocation5], 64, 64, 4
    $region17: #{mmoe_forward.1} parent=1 // pred_fallthru
      _
    // Predicated region
    $region18: #{mmoe_forward.1} parent=1 // pred_check
      _
    $region19: #{mmoe_forward.1} parent=1 // pred_check_branch
      %55 = sbr.rel (0) target = $region21
    $region20: #{mmoe_forward.1} parent=1 // pred_region
      %s57 = ssub.s32 1024, 1024
      %58 = vsyncadd [#allocation8], %s57
      %s59 = sshll.u32 [#allocation7], 4
      %s60 = int_to_ptr.vmem [resolvable:$true] %s59
      %65 = dma.hbm_to_vmem [thread:$0]  %s4, 1024, %s60, [#allocation8], 64, 64, 4
    $region21: #{mmoe_forward.1} parent=1 // pred_fallthru
      _
    // Predicated region
    $region22: #{mmoe_forward.1} parent=1 // pred_check
      _
    $region23: #{mmoe_forward.1} parent=1 // pred_check_branch
      %67 = sbr.rel (0) target = $region25
    $region24: #{mmoe_forward.1} parent=1 // pred_region
      _
    $region25: #{mmoe_forward.1} parent=1 // pred_fallthru
      _
    // Predicated region
    $region26: #{mmoe_forward.1} parent=1 // pred_check
      _
    $region27: #{mmoe_forward.1} parent=1 // pred_check_branch
      %69 = sbr.rel (0) target = $region29
    $region28: #{mmoe_forward.1} parent=1 // pred_region
      _
    $region29: #{mmoe_forward.1} parent=1 // pred_fallthru
      _
    // Predicated region
    $region30: #{mmoe_forward.1} parent=1 // pred_check
      _
    $region31: #{mmoe_forward.1} parent=1 // pred_check_branch
      %71 = sbr.rel (0) target = $region33
    $region32: #{mmoe_forward.1} parent=1 // pred_region
      _
    $region33: #{mmoe_forward.1} parent=1 // pred_fallthru
      _
    // Predicated region
    $region34: #{mmoe_forward.1} parent=1 // pred_check
      _
    $region35: #{mmoe_forward.1} parent=1 // pred_check_branch
      %73 = sbr.rel (0) target = $region37
    $region36: #{mmoe_forward.1} parent=1 // pred_region
      %74 = dma.done [#allocation3], 512
    $region37: #{mmoe_forward.1} parent=1 // pred_fallthru
      _
    // Predicated region
    $region38: #{mmoe_forward.1} parent=1 // pred_check
      _
    $region39: #{mmoe_forward.1} parent=1 // pred_check_branch
      %76 = sbr.rel (0) target = $region41
    $region40: #{mmoe_forward.1} parent=1 // pred_region
      %77 = dma.done [#allocation5], 6144
    $region41: #{mmoe_forward.1} parent=1 // pred_fallthru
      _
    // Predicated region
    $region42: #{mmoe_forward.1} parent=1 // pred_check
      _
    $region43: #{mmoe_forward.1} parent=1 // pred_check_branch
      %79 = sbr.rel (0) target = $region45
    $region44: #{mmoe_forward.1} parent=1 // pred_region
      %80 = dma.done [#allocation5], 2048
    $region45: #{mmoe_forward.1} parent=1 // pred_fallthru
      _
    // Predicated region
    $region46: #{mmoe_forward.1} parent=1 // pred_check
      _
    $region47: #{mmoe_forward.1} parent=1 // pred_check_branch
      %82 = sbr.rel (0) target = $region49
    $region48: #{mmoe_forward.1} parent=1 // pred_region
      %83 = dma.done [#allocation8], 1024
    $region49: #{mmoe_forward.1} parent=1 // pred_fallthru
      _
    %v85 = vld [vmem:[%s0] sm:$0xf]
    %v86 = vld [vmem:[%s0 + $0x4] sm:$0xf]
    %v87 = vld [vmem:[#allocation2] sm:$0xff]
    %v88 = vld [vmem:[#allocation2 + $0x8] sm:$0xff]
    %v89 = vld [vmem:[#allocation2 + $0x10] sm:$0xff]
    %v90 = vld [vmem:[#allocation2 + $0x18] sm:$0xff]
    %v91 = vld [vmem:[%s5] sm:$0x3]
    %v93 = vlaneseq
    %v94 = vshrl.u32 %v93, 7
    %v95 = vsub.s32 0, %v94
    %v96 = vrot.slane %v91, %v95
    %v97 = vlaneseq
    %v98 = vshrl.u32 %v97, 7
    %v99 = vsub.s32 1, %v98
    %v100 = vrot.slane %v91, %v99
    %v105 = vunpack.c.l.b16 %v85
    %v106 = vunpack.c.l.b16 %v86
    %v107 = vpack.c.b16 %v106, %v105
    %v112 = vunpack.c.l.b16 %v87
    %v113 = vunpack.c.h.b16 %v87
    %v114 = vunpack.c.l.b16 %v88
    %v115 = vunpack.c.h.b16 %v88
    %v116 = vunpack.c.l.b16 %v89
    %v117 = vunpack.c.h.b16 %v89
    %v118 = vunpack.c.l.b16 %v90
    %v119 = vunpack.c.h.b16 %v90
    %v120 = vpack.c.b16 %v114, %v112
    %v121 = vpack.c.b16 %v115, %v113
    %v122 = vpack.c.b16 %v118, %v116
    %v123 = vpack.c.b16 %v119, %v117
    %vm128 = vcmask 261120
    %v130 = vsel %vm128, %v107, 0
    %132 = vmatprep.subr.bf16.mxu0 %v121
    %133 = vmatpush1.bf16.msra.mxu0 %v120
    %134 = vmatprep.subr.bf16.mxu0 %v123
    %135 = vmatpush1.bf16.msra.mxu0 %v122
    %136 = vmatprep.subr.bf16.mxu0 0
    %137 = vmatpush1.bf16.msra.mxu0 0
    %138 = vmatprep.subr.bf16.mxu0 0
    %139 = vmatpush1.bf16.msra.mxu0 0
    %140 = vmatprep.subr.bf16.mxu0 0
    %141 = vmatpush1.bf16.msra.mxu0 0
    %142 = vmatprep.subr.bf16.mxu0 0
    %143 = vmatpush1.bf16.msra.mxu0 0
    %144 = vmatprep.subr.bf16.mxu0 0
    %145 = vmatpush1.bf16.msra.mxu0 0
    %146 = vmatprep.subr.bf16.mxu0 0
    %147 = vmatpush1.bf16.msra.mxu0 0
    %148 = vmatprep.subr.bf16.mxu0 0
    %149 = vmatpush1.bf16.msra.mxu0 0
    %150 = vmatprep.subr.bf16.mxu0 0
    %151 = vmatpush1.bf16.msra.mxu0 0
    %152 = vmatprep.subr.bf16.mxu0 0
    %153 = vmatpush1.bf16.msra.mxu0 0
    %154 = vmatprep.subr.bf16.mxu0 0
    %155 = vmatpush1.bf16.msra.mxu0 0
    %156 = vmatprep.subr.bf16.mxu0 0
    %157 = vmatpush1.bf16.msra.mxu0 0
    %158 = vmatprep.subr.bf16.mxu0 0
    %159 = vmatpush1.bf16.msra.mxu0 0
    %160 = vmatprep.subr.bf16.mxu0 0
    %161 = vmatpush1.bf16.msra.mxu0 0
    %162 = vmatprep.subr.bf16.mxu0 0
    %163 = vmatpush1.bf16.msra.mxu0 0
    %164 = vmatprep.mubr.bf16.mxu0 0
    %165 = vmatmul.mubr.bf16.gmra.mrb[0].mxu0 %v130
    %v166 = vpop.f32.mrb[0].mxu0
    %v167 = vadd.f32 %v96, %v166
    %v168 = vpop.f32.mrb[0].mxu0
    %v169 = vadd.f32 %v100, %v168
    %v170 = vpop.f32.mrb[0].mxu0
    %v171 = vadd.f32 %v96, %v170
    %v172 = vpop.f32.mrb[0].mxu0
    %v173 = vadd.f32 %v100, %v172
    %174 = vdwg.mxu0
    %v175 = vmax.f32 %v167, 0.0
    %v176 = vmax.f32 %v169, 0.0
    %v177 = vmax.f32 %v171, 0.0
    %v178 = vmax.f32 %v173, 0.0
    %v179 = vpack.c.bf16 %v177, %v175
    %v180 = vpack.c.bf16 %v178, %v176
    %v181 = vld [vmem:[#allocation4] sm:$0xff]
    %v182 = vld [vmem:[#allocation4 + $0x8] sm:$0xf]
    %v183 = vld [vmem:[#allocation4 + $0xc] sm:$0xff]
    %v184 = vld [vmem:[#allocation4 + $0x14] sm:$0xf]
    %v185 = vld [vmem:[#allocation4 + $0x18] sm:$0xff]
    %v186 = vld [vmem:[#allocation4 + $0x20] sm:$0xf]
    %v187 = vld [vmem:[#allocation4 + $0x24] sm:$0xff]
    %v188 = vld [vmem:[#allocation4 + $0x2c] sm:$0xf]
    %v189 = vld [vmem:[#allocation4 + $0x30] sm:$0xff]
    %v190 = vld [vmem:[#allocation4 + $0x38] sm:$0xf]
    %v191 = vld [vmem:[#allocation4 + $0x3c] sm:$0xff]
    %v192 = vld [vmem:[#allocation4 + $0x44] sm:$0xf]
    %v193 = vld [vmem:[#allocation4 + $0x48] sm:$0xff]
    %v194 = vld [vmem:[#allocation4 + $0x50] sm:$0xf]
    %v195 = vld [vmem:[#allocation4 + $0x54] sm:$0xff]
    %v196 = vld [vmem:[#allocation4 + $0x5c] sm:$0xf]
    %v197 = vld [vmem:[#allocation4 + $0x60] sm:$0xff]
    %v198 = vld [vmem:[#allocation4 + $0x68] sm:$0xf]
    %v199 = vld [vmem:[#allocation4 + $0x6c] sm:$0xff]
    %v200 = vld [vmem:[#allocation4 + $0x74] sm:$0xf]
    %v201 = vld [vmem:[#allocation4 + $0x78] sm:$0xff]
    %v202 = vld [vmem:[#allocation4 + $0x80] sm:$0xf]
    %v203 = vld [vmem:[#allocation4 + $0x84] sm:$0xff]
    %v204 = vld [vmem:[#allocation4 + $0x8c] sm:$0xf]
    %v205 = vld [vmem:[#allocation4 + $0x90] sm:$0xff]
    %v206 = vld [vmem:[#allocation4 + $0x98] sm:$0xf]
    %v207 = vld [vmem:[#allocation4 + $0x9c] sm:$0xff]
    %v208 = vld [vmem:[#allocation4 + $0xa4] sm:$0xf]
    %v209 = vld [vmem:[#allocation4 + $0xa8] sm:$0xff]
    %v210 = vld [vmem:[#allocation4 + $0xb0] sm:$0xf]
    %v211 = vld [vmem:[#allocation4 + $0xb4] sm:$0xff]
    %v212 = vld [vmem:[#allocation4 + $0xbc] sm:$0xf]
    %v213 = vld [vmem:[#allocation4 + $0xc0] sm:$0xff]
    %v214 = vld [vmem:[#allocation4 + $0xc8] sm:$0xf]
    %v215 = vld [vmem:[#allocation4 + $0xcc] sm:$0xff]
    %v216 = vld [vmem:[#allocation4 + $0xd4] sm:$0xf]
    %v217 = vld [vmem:[#allocation4 + $0xd8] sm:$0xff]
    %v218 = vld [vmem:[#allocation4 + $0xe0] sm:$0xf]
    %v219 = vld [vmem:[#allocation4 + $0xe4] sm:$0xff]
    %v220 = vld [vmem:[#allocation4 + $0xec] sm:$0xf]
    %v221 = vld [vmem:[#allocation4 + $0xf0] sm:$0xff]
    %v222 = vld [vmem:[#allocation4 + $0xf8] sm:$0xf]
    %v223 = vld [vmem:[#allocation4 + $0xfc] sm:$0xff]
    %v224 = vld [vmem:[#allocation4 + $0x104] sm:$0xf]
    %v225 = vld [vmem:[#allocation4 + $0x108] sm:$0xff]
    %v226 = vld [vmem:[#allocation4 + $0x110] sm:$0xf]
    %v227 = vld [vmem:[#allocation4 + $0x114] sm:$0xff]
    %v228 = vld [vmem:[#allocation4 + $0x11c] sm:$0xf]
    %v229 = vld [vmem:[#allocation4 + $0x120] sm:$0xff]
    %v230 = vld [vmem:[#allocation4 + $0x128] sm:$0xf]
    %v231 = vld [vmem:[#allocation4 + $0x12c] sm:$0xff]
    %v232 = vld [vmem:[#allocation4 + $0x134] sm:$0xf]
    %v233 = vld [vmem:[#allocation4 + $0x138] sm:$0xff]
    %v234 = vld [vmem:[#allocation4 + $0x140] sm:$0xf]
    %v235 = vld [vmem:[#allocation4 + $0x144] sm:$0xff]
    %v236 = vld [vmem:[#allocation4 + $0x14c] sm:$0xf]
    %v237 = vld [vmem:[#allocation4 + $0x150] sm:$0xff]
    %v238 = vld [vmem:[#allocation4 + $0x158] sm:$0xf]
    %v239 = vld [vmem:[#allocation4 + $0x15c] sm:$0xff]
    %v240 = vld [vmem:[#allocation4 + $0x164] sm:$0xf]
    %v241 = vld [vmem:[#allocation4 + $0x168] sm:$0xff]
    %v242 = vld [vmem:[#allocation4 + $0x170] sm:$0xf]
    %v243 = vld [vmem:[#allocation4 + $0x174] sm:$0xff]
    %v244 = vld [vmem:[#allocation4 + $0x17c] sm:$0xf]
    %v245 = vld [vmem:[%s6] sm:$0x7]
    %v247 = vlaneseq
    %v248 = vshrl.u32 %v247, 7
    %v249 = vsub.s32 0, %v248
    %v250 = vrot.slane %v245, %v249
    %v251 = vlaneseq
    %v252 = vshrl.u32 %v251, 7
    %v253 = vsub.s32 1, %v252
    %v254 = vrot.slane %v245, %v253
    %v255 = vlaneseq
    %v256 = vshrl.u32 %v255, 7
    %v257 = vsub.s32 2, %v256
    %v258 = vrot.slane %v245, %v257
    %v326 = vunpack.c.l.b16 %v181
    %v327 = vunpack.c.h.b16 %v181
    %v328 = vunpack.c.l.b16 %v182
    %v329 = vunpack.c.l.b16 %v183
    %v330 = vunpack.c.h.b16 %v183
    %v331 = vunpack.c.l.b16 %v184
    %v332 = vunpack.c.l.b16 %v185
    %v333 = vunpack.c.h.b16 %v185
    %v334 = vunpack.c.l.b16 %v186
    %v335 = vunpack.c.l.b16 %v187
    %v336 = vunpack.c.h.b16 %v187
    %v337 = vunpack.c.l.b16 %v188
    %v338 = vunpack.c.l.b16 %v189
    %v339 = vunpack.c.h.b16 %v189
    %v340 = vunpack.c.l.b16 %v190
    %v341 = vunpack.c.l.b16 %v191
    %v342 = vunpack.c.h.b16 %v191
    %v343 = vunpack.c.l.b16 %v192
    %v344 = vunpack.c.l.b16 %v193
    %v345 = vunpack.c.h.b16 %v193
    %v346 = vunpack.c.l.b16 %v194
    %v347 = vunpack.c.l.b16 %v195
    %v348 = vunpack.c.h.b16 %v195
    %v349 = vunpack.c.l.b16 %v196
    %v350 = vunpack.c.l.b16 %v197
    %v351 = vunpack.c.h.b16 %v197
    %v352 = vunpack.c.l.b16 %v198
    %v353 = vunpack.c.l.b16 %v199
    %v354 = vunpack.c.h.b16 %v199
    %v355 = vunpack.c.l.b16 %v200
    %v356 = vunpack.c.l.b16 %v201
    %v357 = vunpack.c.h.b16 %v201
    %v358 = vunpack.c.l.b16 %v202
    %v359 = vunpack.c.l.b16 %v203
    %v360 = vunpack.c.h.b16 %v203
    %v361 = vunpack.c.l.b16 %v204
    %v362 = vunpack.c.l.b16 %v205
    %v363 = vunpack.c.h.b16 %v205
    %v364 = vunpack.c.l.b16 %v206
    %v365 = vunpack.c.l.b16 %v207
    %v366 = vunpack.c.h.b16 %v207
    %v367 = vunpack.c.l.b16 %v208
    %v368 = vunpack.c.l.b16 %v209
    %v369 = vunpack.c.h.b16 %v209
    %v370 = vunpack.c.l.b16 %v210
    %v371 = vunpack.c.l.b16 %v211
    %v372 = vunpack.c.h.b16 %v211
    %v373 = vunpack.c.l.b16 %v212
    %v374 = vunpack.c.l.b16 %v213
    %v375 = vunpack.c.h.b16 %v213
    %v376 = vunpack.c.l.b16 %v214
    %v377 = vunpack.c.l.b16 %v215
    %v378 = vunpack.c.h.b16 %v215
    %v379 = vunpack.c.l.b16 %v216
    %v380 = vunpack.c.l.b16 %v217
    %v381 = vunpack.c.h.b16 %v217
    %v382 = vunpack.c.l.b16 %v218
    %v383 = vunpack.c.l.b16 %v219
    %v384 = vunpack.c.h.b16 %v219
    %v385 = vunpack.c.l.b16 %v220
    %v386 = vunpack.c.l.b16 %v221
    %v387 = vunpack.c.h.b16 %v221
    %v388 = vunpack.c.l.b16 %v222
    %v389 = vunpack.c.l.b16 %v223
    %v390 = vunpack.c.h.b16 %v223
    %v391 = vunpack.c.l.b16 %v224
    %v392 = vunpack.c.l.b16 %v225
    %v393 = vunpack.c.h.b16 %v225
    %v394 = vunpack.c.l.b16 %v226
    %v395 = vunpack.c.l.b16 %v227
    %v396 = vunpack.c.h.b16 %v227
    %v397 = vunpack.c.l.b16 %v228
    %v398 = vunpack.c.l.b16 %v229
    %v399 = vunpack.c.h.b16 %v229
    %v400 = vunpack.c.l.b16 %v230
    %v401 = vunpack.c.l.b16 %v231
    %v402 = vunpack.c.h.b16 %v231
    %v403 = vunpack.c.l.b16 %v232
    %v404 = vunpack.c.l.b16 %v233
    %v405 = vunpack.c.h.b16 %v233
    %v406 = vunpack.c.l.b16 %v234
    %v407 = vunpack.c.l.b16 %v235
    %v408 = vunpack.c.h.b16 %v235
    %v409 = vunpack.c.l.b16 %v236
    %v410 = vunpack.c.l.b16 %v237
    %v411 = vunpack.c.h.b16 %v237
    %v412 = vunpack.c.l.b16 %v238
    %v413 = vunpack.c.l.b16 %v239
    %v414 = vunpack.c.h.b16 %v239
    %v415 = vunpack.c.l.b16 %v240
    %v416 = vunpack.c.l.b16 %v241
    %v417 = vunpack.c.h.b16 %v241
    %v418 = vunpack.c.l.b16 %v242
    %v419 = vunpack.c.l.b16 %v243
    %v420 = vunpack.c.h.b16 %v243
    %v421 = vunpack.c.l.b16 %v244
    %v422 = vpack.c.b16 %v329, %v326
    %v423 = vpack.c.b16 %v330, %v327
    %v424 = vpack.c.b16 %v331, %v328
    %v425 = vpack.c.b16 %v335, %v332
    %v426 = vpack.c.b16 %v336, %v333
    %v427 = vpack.c.b16 %v337, %v334
    %v428 = vpack.c.b16 %v341, %v338
    %v429 = vpack.c.b16 %v342, %v339
    %v430 = vpack.c.b16 %v343, %v340
    %v431 = vpack.c.b16 %v347, %v344
    %v432 = vpack.c.b16 %v348, %v345
    %v433 = vpack.c.b16 %v349, %v346
    %v434 = vpack.c.b16 %v353, %v350
    %v435 = vpack.c.b16 %v354, %v351
    %v436 = vpack.c.b16 %v355, %v352
    %v437 = vpack.c.b16 %v359, %v356
    %v438 = vpack.c.b16 %v360, %v357
    %v439 = vpack.c.b16 %v361, %v358
    %v440 = vpack.c.b16 %v365, %v362
    %v441 = vpack.c.b16 %v366, %v363
    %v442 = vpack.c.b16 %v367, %v364
    %v443 = vpack.c.b16 %v371, %v368
    %v444 = vpack.c.b16 %v372, %v369
    %v445 = vpack.c.b16 %v373, %v370
    %v446 = vpack.c.b16 %v377, %v374
    %v447 = vpack.c.b16 %v378, %v375
    %v448 = vpack.c.b16 %v379, %v376
    %v449 = vpack.c.b16 %v383, %v380
    %v450 = vpack.c.b16 %v384, %v381
    %v451 = vpack.c.b16 %v385, %v382
    %v452 = vpack.c.b16 %v389, %v386
    %v453 = vpack.c.b16 %v390, %v387
    %v454 = vpack.c.b16 %v391, %v388
    %v455 = vpack.c.b16 %v395, %v392
    %v456 = vpack.c.b16 %v396, %v393
    %v457 = vpack.c.b16 %v397, %v394
    %v458 = vpack.c.b16 %v401, %v398
    %v459 = vpack.c.b16 %v402, %v399
    %v460 = vpack.c.b16 %v403, %v400
    %v461 = vpack.c.b16 %v407, %v404
    %v462 = vpack.c.b16 %v408, %v405
    %v463 = vpack.c.b16 %v409, %v406
    %v464 = vpack.c.b16 %v413, %v410
    %v465 = vpack.c.b16 %v414, %v411
    %v466 = vpack.c.b16 %v415, %v412
    %v467 = vpack.c.b16 %v419, %v416
    %v468 = vpack.c.b16 %v420, %v417
    %v469 = vpack.c.b16 %v421, %v418
    %518 = vmatprep.subr.bf16.mxu0 %v423
    %519 = vmatpush1.bf16.msra.mxu0 %v422
    %520 = vmatprep.subr.bf16.mxu0 %v426
    %521 = vmatpush1.bf16.msra.mxu0 %v425
    %522 = vmatprep.subr.bf16.mxu0 %v429
    %523 = vmatpush1.bf16.msra.mxu0 %v428
    %524 = vmatprep.subr.bf16.mxu0 %v432
    %525 = vmatpush1.bf16.msra.mxu0 %v431
    %526 = vmatprep.subr.bf16.mxu0 %v435
    %527 = vmatpush1.bf16.msra.mxu0 %v434
    %528 = vmatprep.subr.bf16.mxu0 %v438
    %529 = vmatpush1.bf16.msra.mxu0 %v437
    %530 = vmatprep.subr.bf16.mxu0 %v441
    %531 = vmatpush1.bf16.msra.mxu0 %v440
    %532 = vmatprep.subr.bf16.mxu0 %v444
    %533 = vmatpush1.bf16.msra.mxu0 %v443
    %534 = vmatprep.subr.bf16.mxu0 %v447
    %535 = vmatpush1.bf16.msra.mxu0 %v446
    %536 = vmatprep.subr.bf16.mxu0 %v450
    %537 = vmatpush1.bf16.msra.mxu0 %v449
    %538 = vmatprep.subr.bf16.mxu0 %v453
    %539 = vmatpush1.bf16.msra.mxu0 %v452
    %540 = vmatprep.subr.bf16.mxu0 %v456
    %541 = vmatpush1.bf16.msra.mxu0 %v455
    %542 = vmatprep.subr.bf16.mxu0 %v459
    %543 = vmatpush1.bf16.msra.mxu0 %v458
    %544 = vmatprep.subr.bf16.mxu0 %v462
    %545 = vmatpush1.bf16.msra.mxu0 %v461
    %546 = vmatprep.subr.bf16.mxu0 %v465
    %547 = vmatpush1.bf16.msra.mxu0 %v464
    %548 = vmatprep.subr.bf16.mxu0 %v468
    %549 = vmatpush1.bf16.msra.mxu0 %v467
    %550 = vmatprep.mubr.bf16.mxu0 %v180
    %551 = vmatmul.mubr.bf16.gmra.mrb[0].mxu0 %v179
    %v552 = vpop.f32.mrb[0].mxu0
    %v553 = vadd.f32 %v250, %v552
    %v554 = vpop.f32.mrb[0].mxu0
    %v555 = vadd.f32 %v254, %v554
    %v556 = vpop.f32.mrb[0].mxu0
    %v557 = vadd.f32 %v250, %v556
    %v558 = vpop.f32.mrb[0].mxu0
    %v559 = vadd.f32 %v254, %v558
    %560 = vdwg.mxu0
    %561 = vmatprep.subr.bf16.mxu0 0
    %562 = vmatpush1.bf16.msra.mxu0 %v424
    %563 = vmatprep.subr.bf16.mxu0 0
    %564 = vmatpush1.bf16.msra.mxu0 %v427
    %565 = vmatprep.subr.bf16.mxu0 0
    %566 = vmatpush1.bf16.msra.mxu0 %v430
    %567 = vmatprep.subr.bf16.mxu0 0
    %568 = vmatpush1.bf16.msra.mxu0 %v433
    %569 = vmatprep.subr.bf16.mxu0 0
    %570 = vmatpush1.bf16.msra.mxu0 %v436
    %571 = vmatprep.subr.bf16.mxu0 0
    %572 = vmatpush1.bf16.msra.mxu0 %v439
    %573 = vmatprep.subr.bf16.mxu0 0
    %574 = vmatpush1.bf16.msra.mxu0 %v442
    %575 = vmatprep.subr.bf16.mxu0 0
    %576 = vmatpush1.bf16.msra.mxu0 %v445
    %577 = vmatprep.subr.bf16.mxu0 0
    %578 = vmatpush1.bf16.msra.mxu0 %v448
    %579 = vmatprep.subr.bf16.mxu0 0
    %580 = vmatpush1.bf16.msra.mxu0 %v451
    %581 = vmatprep.subr.bf16.mxu0 0
    %582 = vmatpush1.bf16.msra.mxu0 %v454
    %583 = vmatprep.subr.bf16.mxu0 0
    %584 = vmatpush1.bf16.msra.mxu0 %v457
    %585 = vmatprep.subr.bf16.mxu0 0
    %586 = vmatpush1.bf16.msra.mxu0 %v460
    %587 = vmatprep.subr.bf16.mxu0 0
    %588 = vmatpush1.bf16.msra.mxu0 %v463
    %589 = vmatprep.subr.bf16.mxu0 0
    %590 = vmatpush1.bf16.msra.mxu0 %v466
    %591 = vmatprep.subr.bf16.mxu0 0
    %592 = vmatpush1.bf16.msra.mxu0 %v469
    %593 = vmatprep.mubr.bf16.mxu0 %v180
    %594 = vmatmul.mubr.bf16.gmra.mrb[0].mxu0 %v179
    %v595 = vpop.f32.mrb[0].mxu0
    %v596 = vadd.f32 %v258, %v595
    %v597 = vpop.f32.mrb[0].mxu0
    %v598 = vpop.f32.mrb[0].mxu0
    %v599 = vadd.f32 %v258, %v598
    %v600 = vpop.f32.mrb[0].mxu0
    %601 = vdwg.mxu0
    %v602 = vmax.f32 %v553, 0.0
    %v603 = vmax.f32 %v557, 0.0
    %604 = vmax.xlane.f32.xlu0 %v555
    %v605 = vpop.xlane.xlu0 %604
    %606 = vmax.xlane.f32.xlu0 %v559
    %v607 = vpop.xlane.xlu0 %606
    %608 = vmax.xlane.f32.xlu0 %v596
    %v609 = vpop.xlane.xlu0 %608
    %610 = vmax.xlane.f32.xlu0 %v599
    %v611 = vpop.xlane.xlu0 %610
    %v612 = vsub.f32 %v555, %v605
    %v613 = vsub.f32 %v559, %v607
    %v614 = vmul.f32 %v612, 1.442695
    %v615 = vpow.pop %v614
    %v616 = vmul.f32 %v613, 1.442695
    %v617 = vpow.pop %v616
    %v618 = vsub.f32 %v596, %v609
    %v619 = vsub.f32 %v599, %v611
    %v620 = vmul.f32 %v618, 1.442695
    %v621 = vpow.pop %v620
    %v622 = vmul.f32 %v619, 1.442695
    %v623 = vpow.pop %v622
    %624 = vadd.xlane.f32.xlu0 %v615
    %v625 = vpop.xlane.xlu0 %624
    %626 = vadd.xlane.f32.xlu0 %v617
    %v627 = vpop.xlane.xlu0 %626
    %v628 = vrcp.pop %v625
    %v629 = vmul.f32 32.0, %v628
    %v630 = vrcp.pop %v627
    %v631 = vmul.f32 32.0, %v630
    %632 = vadd.xlane.f32.xlu0 %v621
    %v633 = vpop.xlane.xlu0 %632
    %634 = vadd.xlane.f32.xlu0 %v623
    %v635 = vpop.xlane.xlu0 %634
    %v636 = vrcp.pop %v633
    %v637 = vmul.f32 32.0, %v636
    %v638 = vrcp.pop %v635
    %v639 = vmul.f32 32.0, %v638
    %v640 = vmul.f32 %v615, %v629
    %v641 = vmul.f32 %v617, %v631
    %v642 = vmul.f32 %v640, %v602
    %v643 = vmul.f32 %v641, %v603
    %v644 = vmul.f32 %v621, %v637
    %v645 = vmul.f32 %v623, %v639
    %v646 = vmul.f32 %v644, %v602
    %v647 = vmul.f32 %v645, %v603
    %v648 = vpack.c.bf16 %v643, %v642
    %v649 = vpack.c.bf16 %v647, %v646
    %v650 = vld [vmem:[#allocation6] sm:$0xf]
    %v651 = vld [vmem:[#allocation6 + $0x4] sm:$0xf]
    %v652 = vld [vmem:[#allocation6 + $0x8] sm:$0xf]
    %v653 = vld [vmem:[#allocation6 + $0xc] sm:$0xf]
    %v654 = vld [vmem:[#allocation6 + $0x10] sm:$0xf]
    %v655 = vld [vmem:[#allocation6 + $0x14] sm:$0xf]
    %v656 = vld [vmem:[#allocation6 + $0x18] sm:$0xf]
    %v657 = vld [vmem:[#allocation6 + $0x1c] sm:$0xf]
    %v658 = vld [vmem:[#allocation6 + $0x20] sm:$0xf]
    %v659 = vld [vmem:[#allocation6 + $0x24] sm:$0xf]
    %v660 = vld [vmem:[#allocation6 + $0x28] sm:$0xf]
    %v661 = vld [vmem:[#allocation6 + $0x2c] sm:$0xf]
    %v662 = vld [vmem:[#allocation6 + $0x30] sm:$0xf]
    %v663 = vld [vmem:[#allocation6 + $0x34] sm:$0xf]
    %v664 = vld [vmem:[#allocation6 + $0x38] sm:$0xf]
    %v665 = vld [vmem:[#allocation6 + $0x3c] sm:$0xf]
    %v666 = vld [vmem:[#allocation6 + $0x40] sm:$0xf]
    %v667 = vld [vmem:[#allocation6 + $0x44] sm:$0xf]
    %v668 = vld [vmem:[#allocation6 + $0x48] sm:$0xf]
    %v669 = vld [vmem:[#allocation6 + $0x4c] sm:$0xf]
    %v670 = vld [vmem:[#allocation6 + $0x50] sm:$0xf]
    %v671 = vld [vmem:[#allocation6 + $0x54] sm:$0xf]
    %v672 = vld [vmem:[#allocation6 + $0x58] sm:$0xf]
    %v673 = vld [vmem:[#allocation6 + $0x5c] sm:$0xf]
    %v674 = vld [vmem:[#allocation6 + $0x60] sm:$0xf]
    %v675 = vld [vmem:[#allocation6 + $0x64] sm:$0xf]
    %v676 = vld [vmem:[#allocation6 + $0x68] sm:$0xf]
    %v677 = vld [vmem:[#allocation6 + $0x6c] sm:$0xf]
    %v678 = vld [vmem:[#allocation6 + $0x70] sm:$0xf]
    %v679 = vld [vmem:[#allocation6 + $0x74] sm:$0xf]
    %v680 = vld [vmem:[#allocation6 + $0x78] sm:$0xf]
    %v681 = vld [vmem:[#allocation6 + $0x7c] sm:$0xf]
    %v682 = vld [vmem:[%s7] sm:$0x1]
    %v684 = vlaneseq
    %v685 = vshrl.u32 %v684, 7
    %v686 = vsub.s32 0, %v685
    %v687 = vrot.slane %v682, %v686
    %v721 = vunpack.c.l.b16 %v650
    %v722 = vunpack.c.l.b16 %v651
    %v723 = vunpack.c.l.b16 %v652
    %v724 = vunpack.c.l.b16 %v653
    %v725 = vunpack.c.l.b16 %v654
    %v726 = vunpack.c.l.b16 %v655
    %v727 = vunpack.c.l.b16 %v656
    %v728 = vunpack.c.l.b16 %v657
    %v729 = vunpack.c.l.b16 %v658
    %v730 = vunpack.c.l.b16 %v659
    %v731 = vunpack.c.l.b16 %v660
    %v732 = vunpack.c.l.b16 %v661
    %v733 = vunpack.c.l.b16 %v662
    %v734 = vunpack.c.l.b16 %v663
    %v735 = vunpack.c.l.b16 %v664
    %v736 = vunpack.c.l.b16 %v665
    %v737 = vunpack.c.l.b16 %v666
    %v738 = vunpack.c.l.b16 %v667
    %v739 = vunpack.c.l.b16 %v668
    %v740 = vunpack.c.l.b16 %v669
    %v741 = vunpack.c.l.b16 %v670
    %v742 = vunpack.c.l.b16 %v671
    %v743 = vunpack.c.l.b16 %v672
    %v744 = vunpack.c.l.b16 %v673
    %v745 = vunpack.c.l.b16 %v674
    %v746 = vunpack.c.l.b16 %v675
    %v747 = vunpack.c.l.b16 %v676
    %v748 = vunpack.c.l.b16 %v677
    %v749 = vunpack.c.l.b16 %v678
    %v750 = vunpack.c.l.b16 %v679
    %v751 = vunpack.c.l.b16 %v680
    %v752 = vunpack.c.l.b16 %v681
    %v753 = vpack.c.b16 %v722, %v721
    %v754 = vpack.c.b16 %v724, %v723
    %v755 = vpack.c.b16 %v726, %v725
    %v756 = vpack.c.b16 %v728, %v727
    %v757 = vpack.c.b16 %v730, %v729
    %v758 = vpack.c.b16 %v732, %v731
    %v759 = vpack.c.b16 %v734, %v733
    %v760 = vpack.c.b16 %v736, %v735
    %v761 = vpack.c.b16 %v738, %v737
    %v762 = vpack.c.b16 %v740, %v739
    %v763 = vpack.c.b16 %v742, %v741
    %v764 = vpack.c.b16 %v744, %v743
    %v765 = vpack.c.b16 %v746, %v745
    %v766 = vpack.c.b16 %v748, %v747
    %v767 = vpack.c.b16 %v750, %v749
    %v768 = vpack.c.b16 %v752, %v751
    %785 = vmatprep.subr.bf16.mxu0 0
    %786 = vmatpush1.bf16.msra.mxu0 %v753
    %787 = vmatprep.subr.bf16.mxu0 0
    %788 = vmatpush1.bf16.msra.mxu0 %v754
    %789 = vmatprep.subr.bf16.mxu0 0
    %790 = vmatpush1.bf16.msra.mxu0 %v755
    %791 = vmatprep.subr.bf16.mxu0 0
    %792 = vmatpush1.bf16.msra.mxu0 %v756
    %793 = vmatprep.subr.bf16.mxu0 0
    %794 = vmatpush1.bf16.msra.mxu0 %v757
    %795 = vmatprep.subr.bf16.mxu0 0
    %796 = vmatpush1.bf16.msra.mxu0 %v758
    %797 = vmatprep.subr.bf16.mxu0 0
    %798 = vmatpush1.bf16.msra.mxu0 %v759
    %799 = vmatprep.subr.bf16.mxu0 0
    %800 = vmatpush1.bf16.msra.mxu0 %v760
    %801 = vmatprep.subr.bf16.mxu0 0
    %802 = vmatpush1.bf16.msra.mxu0 %v761
    %803 = vmatprep.subr.bf16.mxu0 0
    %804 = vmatpush1.bf16.msra.mxu0 %v762
    %805 = vmatprep.subr.bf16.mxu0 0
    %806 = vmatpush1.bf16.msra.mxu0 %v763
    %807 = vmatprep.subr.bf16.mxu0 0
    %808 = vmatpush1.bf16.msra.mxu0 %v764
    %809 = vmatprep.subr.bf16.mxu0 0
    %810 = vmatpush1.bf16.msra.mxu0 %v765
    %811 = vmatprep.subr.bf16.mxu0 0
    %812 = vmatpush1.bf16.msra.mxu0 %v766
    %813 = vmatprep.subr.bf16.mxu0 0
    %814 = vmatpush1.bf16.msra.mxu0 %v767
    %815 = vmatprep.subr.bf16.mxu0 0
    %816 = vmatpush1.bf16.msra.mxu0 %v768
    %817 = vmatprep.mubr.bf16.mxu0 %v649
    %818 = vmatmul.mubr.bf16.gmra.mrb[0].mxu0 %v648
    %v819 = vpop.f32.mrb[0].mxu0
    %v820 = vadd.f32 %v687, %v819
    %v821 = vpop.f32.mrb[0].mxu0
    %v822 = vpop.f32.mrb[0].mxu0
    %v823 = vadd.f32 %v687, %v822
    %v824 = vpop.f32.mrb[0].mxu0
    %825 = vdwg.mxu0
    %v826 = vmax.f32 %v820, 0.0
    %v827 = vmax.f32 %v823, 0.0
    %v828 = vpack.c.bf16 %v827, %v826
    %v829 = vld [vmem:[#allocation7] sm:$0xf]
    %v830 = vld [vmem:[#allocation7 + $0x4] sm:$0xf]
    %v831 = vld [vmem:[#allocation7 + $0x8] sm:$0xf]
    %v832 = vld [vmem:[#allocation7 + $0xc] sm:$0xf]
    %v833 = vld [vmem:[#allocation7 + $0x10] sm:$0xf]
    %v834 = vld [vmem:[#allocation7 + $0x14] sm:$0xf]
    %v835 = vld [vmem:[#allocation7 + $0x18] sm:$0xf]
    %v836 = vld [vmem:[#allocation7 + $0x1c] sm:$0xf]
    %v837 = vld [vmem:[#allocation7 + $0x20] sm:$0xf]
    %v838 = vld [vmem:[#allocation7 + $0x24] sm:$0xf]
    %v839 = vld [vmem:[#allocation7 + $0x28] sm:$0xf]
    %v840 = vld [vmem:[#allocation7 + $0x2c] sm:$0xf]
    %v841 = vld [vmem:[#allocation7 + $0x30] sm:$0xf]
    %v842 = vld [vmem:[#allocation7 + $0x34] sm:$0xf]
    %v843 = vld [vmem:[#allocation7 + $0x38] sm:$0xf]
    %v844 = vld [vmem:[#allocation7 + $0x3c] sm:$0xf]
    %v861 = vunpack.c.l.b16 %v829
    %v862 = vunpack.c.l.b16 %v830
    %v863 = vunpack.c.l.b16 %v831
    %v864 = vunpack.c.l.b16 %v832
    %v865 = vunpack.c.l.b16 %v833
    %v866 = vunpack.c.l.b16 %v834
    %v867 = vunpack.c.l.b16 %v835
    %v868 = vunpack.c.l.b16 %v836
    %v869 = vunpack.c.l.b16 %v837
    %v870 = vunpack.c.l.b16 %v838
    %v871 = vunpack.c.l.b16 %v839
    %v872 = vunpack.c.l.b16 %v840
    %v873 = vunpack.c.l.b16 %v841
    %v874 = vunpack.c.l.b16 %v842
    %v875 = vunpack.c.l.b16 %v843
    %v876 = vunpack.c.l.b16 %v844
    %v877 = vpack.c.b16 %v862, %v861
    %v878 = vpack.c.b16 %v864, %v863
    %v879 = vpack.c.b16 %v866, %v865
    %v880 = vpack.c.b16 %v868, %v867
    %v881 = vpack.c.b16 %v870, %v869
    %v882 = vpack.c.b16 %v872, %v871
    %v883 = vpack.c.b16 %v874, %v873
    %v884 = vpack.c.b16 %v876, %v875
    %893 = vmatprep.subr.bf16.mxu0 0
    %894 = vmatpush1.bf16.msra.mxu0 %v877
    %895 = vmatprep.subr.bf16.mxu0 0
    %896 = vmatpush1.bf16.msra.mxu0 %v878
    %897 = vmatprep.subr.bf16.mxu0 0
    %898 = vmatpush1.bf16.msra.mxu0 %v879
    %899 = vmatprep.subr.bf16.mxu0 0
    %900 = vmatpush1.bf16.msra.mxu0 %v880
    %901 = vmatprep.subr.bf16.mxu0 0
    %902 = vmatpush1.bf16.msra.mxu0 %v881
    %903 = vmatprep.subr.bf16.mxu0 0
    %904 = vmatpush1.bf16.msra.mxu0 %v882
    %905 = vmatprep.subr.bf16.mxu0 0
    %906 = vmatpush1.bf16.msra.mxu0 %v883
    %907 = vmatprep.subr.bf16.mxu0 0
    %908 = vmatpush1.bf16.msra.mxu0 %v884
    %909 = vmatprep.subr.bf16.mxu0 0
    %910 = vmatpush1.bf16.msra.mxu0 0
    %911 = vmatprep.subr.bf16.mxu0 0
    %912 = vmatpush1.bf16.msra.mxu0 0
    %913 = vmatprep.subr.bf16.mxu0 0
    %914 = vmatpush1.bf16.msra.mxu0 0
    %915 = vmatprep.subr.bf16.mxu0 0
    %916 = vmatpush1.bf16.msra.mxu0 0
    %917 = vmatprep.subr.bf16.mxu0 0
    %918 = vmatpush1.bf16.msra.mxu0 0
    %919 = vmatprep.subr.bf16.mxu0 0
    %920 = vmatpush1.bf16.msra.mxu0 0
    %921 = vmatprep.subr.bf16.mxu0 0
    %922 = vmatpush1.bf16.msra.mxu0 0
    %923 = vmatprep.subr.bf16.mxu0 0
    %924 = vmatpush1.bf16.msra.mxu0 0
    %925 = vmatprep.mubr.bf16.mxu0 0
    %926 = vmatmul.mubr.bf16.gmra.mrb[0].mxu0 %v828
    %v927 = vpop.f32.mrb[0].mxu0
    %v928 = vadd.f32 0.0, %v927
    %v929 = vpop.f32.mrb[0].mxu0
    %v930 = vpop.f32.mrb[0].mxu0
    %v931 = vadd.f32 0.0, %v930
    %v932 = vpop.f32.mrb[0].mxu0
    %933 = vdwg.mxu0
    %v934 = vxor.u32 %v928, 2147483648
    %v935 = vxor.u32 %v931, 2147483648
    %v936 = vmul.f32 %v934, 1.442695
    %v937 = vpow.pop %v936
    %v938 = vmul.f32 %v935, 1.442695
    %v939 = vpow.pop %v938
    %v940 = vadd.f32 %v937, 1.0
    %v941 = vadd.f32 %v939, 1.0
    %v942 = vrcp.pop %v940
    %v943 = vmul.f32 1.0, %v942
    %v944 = vrcp.pop %v941
    %v945 = vmul.f32 1.0, %v944
    %946 = vst [vmem:[%s8] sm:$0xff] %v943
    %947 = vst [vmem:[%s8 + $0x8] sm:$0xff] %v945
    // Predicated region
    $region50: #{mmoe_forward.1} parent=1 // pred_check
      _
    $region51: #{mmoe_forward.1} parent=1 // pred_check_branch
      %949 = sbr.rel (0) target = $region53
    $region52: #{mmoe_forward.1} parent=1 // pred_region
      _
    $region53: #{mmoe_forward.1} parent=1 // pred_fallthru
      _
    // Predicated region
    $region54: #{mmoe_forward.1} parent=1 // pred_check
      _
    $region55: #{mmoe_forward.1} parent=1 // pred_check_branch
      %951 = sbr.rel (0) target = $region57
    $region56: #{mmoe_forward.1} parent=1 // pred_region
      _
    $region57: #{mmoe_forward.1} parent=1 // pred_fallthru
      _
    %952 = vsyncpa [#allocation3], 1
    %953 = vsyncpa [#allocation5], 1
    %954 = vsyncpa [#allocation8], 1

</llo_original>
